<compile_context>
chip_gen: v6e
topology: v6e:2x2x1
jax: 0.10.0
libtpu: 0.0.40
codegen_flags: <defaults>
</compile_context>

<pallas_src>
import math

import jax
import jax.numpy as jnp
from jax.experimental import pallas as pl
from jax.experimental.pallas import tpu as pltpu


def _round_up(x, m):
    return (x + m - 1) // m * m


def _make_kernel(n_hidden, mm_dtype, approx_recip):
    def _mish(v):
        # mish(x) = x*tanh(softplus(x)) = x * g/(g+2),  g = t(t+2),  t = exp(x).
        # Exact reformulation in f32 (clamp keeps exp finite; tail limits match).
        t = jnp.exp(jnp.minimum(v, 20.0))
        g = t * (t + 2.0)
        return v * g * pl.reciprocal(g + 2.0, approx=approx_recip)

    def kernel(x_ref, w0t_ref, wht_ref, bht_ref, wot_ref, bo_ref, out_ref):
        x = x_ref[...]                                          # [TILE_B, IN]

        # Layer 0 (CancelOut gate already folded into w0t).  Contract over the
        # input dim of both operands so the result lands batch-on-lanes
        # [latent, TILE_B] directly (transposed-RHS matmul, see header item 5).
        h_t = jnp.einsum("oi,bi->ob", w0t_ref[...], x,
                         preferred_element_type=jnp.float32)
        h_t = _mish(h_t + bht_ref[:, 0:1])

        # Hidden layers 1..n_hidden-1: [L,L] @ [L, TILE_B]  (N = TILE_B, lane-dense)
        for k in range(n_hidden - 1):
            hm = jnp.dot(wht_ref[k], h_t.astype(mm_dtype),
                         preferred_element_type=jnp.float32)
            h_t = _mish(hm + bht_ref[:, k + 1:k + 2])

        # Output layer: [n_out, L] @ [L, TILE_B] + b  -> lane-dense store.
        out_ref[...] = (jnp.dot(wot_ref[...], h_t.astype(mm_dtype),
                                preferred_element_type=jnp.float32)
                        + bo_ref[...])

    return kernel


def model_with_cancelout(x, params, *, max_tile_b=4096, use_bf16=False,
                         approx_recip=False):
    """x: [B, input_size] float32. Returns [B, n_out] float32 (eval forward)."""
    B, input_size = x.shape
    latent = params["w0"].shape[1]
    n_out = params["wout"].shape[1]
    n_hidden = sum(1 for k in params if k.startswith("w") and k != "wout")

    mm_dtype = jnp.bfloat16 if use_bf16 else jnp.float32

    # ---- batch tiling: 128-multiple rows, >=2 grid steps for v7x dual-TC ----
    b_pad = _round_up(max(B, 128), 128)
    min_steps = 2 if b_pad >= 256 else 1
    steps = max(pl.cdiv(b_pad, max_tile_b), min_steps)
    tile_b = _round_up(pl.cdiv(b_pad, steps), 128)
    b_pad = tile_b * steps

    xk = x.astype(mm_dtype)
    if b_pad != B:
        xk = jnp.pad(xk, ((0, b_pad - B), (0, 0)))

    # ---- pack / pre-transform parameters (outside the kernel, once) ----
    gate = jax.nn.sigmoid(params["cancel_w"])                          # [IN]
    w0t = (gate[:, None] * params["w0"]).T.astype(mm_dtype)            # [L, IN]
    wht = jnp.stack([params[f"w{k}"].T
                     for k in range(1, n_hidden)]).astype(mm_dtype)    # [H-1, L, L]
    bht = jnp.stack([params[f"b{k}"] for k in range(n_hidden)],
                    axis=1).astype(jnp.float32)                        # [L, H]
    wot = params["wout"].T.astype(mm_dtype)                            # [n_out, L]
    bo = params["bout"].reshape(n_out, 1).astype(jnp.float32)          # [n_out, 1]

    def const_spec(a):
        nd = a.ndim
        return pl.BlockSpec(a.shape, lambda i, _nd=nd: (0,) * _nd)

    # ---- VMEM budget sized to actual need (+slack), not a blanket 32 MiB ----
    elt = jnp.dtype(mm_dtype).itemsize
    vmem_limit = (2 * tile_b * _round_up(input_size, 128) * elt   # x, 2 bufs, lane-padded
                  + 2 * _round_up(n_out, 8) * tile_b * 4          # out, 2 bufs
                  + 8 * latent * tile_b * 4                       # activation temporaries
                  + 6 * 1024 * 1024)                              # weights + compiler slack
    vmem_limit = int(min(vmem_limit, 96 * 1024 * 1024))

    kernel = _make_kernel(n_hidden, mm_dtype, approx_recip)

    out_t = pl.pallas_call(
        kernel,
        out_shape=jax.ShapeDtypeStruct((n_out, b_pad), jnp.float32),
        grid=(b_pad // tile_b,),
        in_specs=[
            pl.BlockSpec((tile_b, input_size), lambda i: (i, 0)),      # x tile
            const_spec(w0t), const_spec(wht), const_spec(bht),
            const_spec(wot), const_spec(bo),
        ],
        out_specs=pl.BlockSpec((n_out, tile_b), lambda i: (0, i)),     # lane-dense
        compiler_params=pltpu.CompilerParams(
            dimension_semantics=("parallel",),
            vmem_limit_bytes=vmem_limit,
        ),
    )(xk, w0t, wht, bht, wot, bo)

    return out_t[:, :B].T


# ----------------------- parameter init (matches torch init) -----------------------

def _kaiming_uniform(key, fan_in, shape):
    # torch.nn.init.kaiming_uniform_ (a=0, leaky_relu): bound = sqrt(6 / fan_in)
    bound = math.sqrt(6.0 / fan_in)
    return jax.random.uniform(key, shape, jnp.float32, -bound, bound)


def init_params(key, input_size, latent_size, n_out):
    keys = jax.random.split(key, 6)
    p = {"cancel_w": jnp.full((input_size,), 4.0, jnp.float32)}   # CancelOut gate
    p["w0"] = _kaiming_uniform(keys[0], input_size, (input_size, latent_size))
    p["b0"] = jnp.full((latent_size,), 0.001, jnp.float32)
    for k in range(1, 5):
        p[f"w{k}"] = _kaiming_uniform(keys[k], latent_size,
                                      (latent_size, latent_size))
        p[f"b{k}"] = jnp.full((latent_size,), 0.001, jnp.float32)
    p["wout"] = _kaiming_uniform(keys[5], latent_size, (latent_size, n_out))
    p["bout"] = jnp.full((n_out,), 0.001, jnp.float32)
    return p


if __name__ == "__main__":
    input_size = 32
    latent_size = 16
    n_out = 1          # n_classes = 2  ->  n_out = 1
    batch = 16

    key = jax.random.PRNGKey(0)
    k_x, k_p = jax.random.split(key)
    x = jax.random.normal(k_x, (batch, input_size), dtype=jnp.float32)
    params = init_params(k_p, input_size, latent_size, n_out)

    # Pure-JAX reference (canonical mish / unfused CancelOut)
    def mish_ref(v):
        return v * jnp.tanh(jax.nn.softplus(v))

    def ref(x, p):
        h = x * jax.nn.sigmoid(p["cancel_w"])
        h = mish_ref(h @ p["w0"] + p["b0"])
        for k in range(1, 5):
            h = mish_ref(h @ p[f"w{k}"] + p[f"b{k}"])
        return h @ p["wout"] + p["bout"]

    expected = ref(x, params)

    # 1) Default exact path (f32 operands, exact reciprocal): matches reference
    #    within the module's f32 numerics.
    out = jax.block_until_ready(model_with_cancelout(x, params))
    assert out.shape == (batch, n_out), out.shape
    assert jnp.allclose(out, expected, atol=1e-4, rtol=1e-4), (
        float(jnp.max(jnp.abs(out - expected))))

    # 2) Fast path (bf16 matmul operands + approx reciprocal) — recommended on
    #    v5e's bf16-native MXU; validated at a looser tolerance.
    out_fast = jax.block_until_ready(
        model_with_cancelout(x, params, use_bf16=True, approx_recip=True))
    assert out_fast.shape == (batch, n_out), out_fast.shape
    assert jnp.allclose(out_fast, expected, atol=1e-1, rtol=1e-1), (
        float(jnp.max(jnp.abs(out_fast - expected))))

    print("KERNEL_OK")
</pallas_src>

<mosaic_0001>
module attributes {stable_mosaic.version = 11 : i64} {
  func.func @kernel(%arg0: i32, %arg1: memref<128x32xf32, #tpu.memory_space<vmem>>, %arg2: memref<16x32xf32, #tpu.memory_space<vmem>>, %arg3: memref<4x16x16xf32, #tpu.memory_space<vmem>>, %arg4: memref<16x5xf32, #tpu.memory_space<vmem>>, %arg5: memref<1x16xf32, #tpu.memory_space<vmem>>, %arg6: memref<1x1xf32, #tpu.memory_space<vmem>>, %arg7: memref<1x128xf32, #tpu.memory_space<vmem>>) attributes {dimension_semantics = [#tpu.dimension_semantics<parallel>], iteration_bounds = array<i64: 1>, scalar_prefetch = 0 : i64, scratch_operands = 0 : i64, tpu.core_type = #tpu.core_type<tc>, window_params = [{transform_indices = @transform_0, window_bounds = array<i64: 128, 32>}, {pipeline_mode = #tpu.pipeline_mode<synchronous>, transform_indices = @transform_1, window_bounds = array<i64: 16, 32>}, {pipeline_mode = #tpu.pipeline_mode<synchronous>, transform_indices = @transform_2, window_bounds = array<i64: 4, 16, 16>}, {pipeline_mode = #tpu.pipeline_mode<synchronous>, transform_indices = @transform_3, window_bounds = array<i64: 16, 5>}, {pipeline_mode = #tpu.pipeline_mode<synchronous>, transform_indices = @transform_4, window_bounds = array<i64: 1, 16>}, {pipeline_mode = #tpu.pipeline_mode<synchronous>, transform_indices = @transform_5, window_bounds = array<i64: 1, 1>}, {transform_indices = @transform_6, window_bounds = array<i64: 1, 128>}]} {
    %c0 = arith.constant 0 : index
    %c0_0 = arith.constant 0 : index
    %0 = vector.load %arg1[%c0, %c0_0] : memref<128x32xf32, #tpu.memory_space<vmem>>, vector<128x32xf32>
    %c0_1 = arith.constant 0 : index
    %c0_2 = arith.constant 0 : index
    %1 = vector.load %arg2[%c0_1, %c0_2] : memref<16x32xf32, #tpu.memory_space<vmem>>, vector<16x32xf32>
    "tpu.trace_start"() <{level = 10 : i32, message = "oi,bi->ob"}> : () -> ()
    %cst = arith.constant dense<0.000000e+00> : vector<16x128xf32>
    %2 = tpu.matmul %1, %0, %cst {dimension_numbers = #tpu.dot_dimension_numbers<[1], [1], [0], [0], [0, 0, 1, 0], [], []>} : vector<16x32xf32>, vector<128x32xf32>, vector<16x128xf32> -> vector<16x128xf32>
    "tpu.trace_stop"() : () -> ()
    %c0_3 = arith.constant 0 : index
    %c0_4 = arith.constant 0 : index
    %3 = vector.load %arg4[%c0_3, %c0_4] : memref<16x5xf32, #tpu.memory_space<vmem>>, vector<16x1xf32>
    %4 = vector.broadcast %3 : vector<16x1xf32> to vector<16x128xf32>
    %5 = arith.addf %2, %4 : vector<16x128xf32>
    %cst_5 = arith.constant 2.000000e+01 : f32
    %6 = vector.broadcast %cst_5 : f32 to vector<16x128xf32>
    %7 = arith.minimumf %5, %6 : vector<16x128xf32>
    %8 = math.exp %7 : vector<16x128xf32>
    %cst_6 = arith.constant 2.000000e+00 : f32
    %9 = vector.broadcast %cst_6 : f32 to vector<16x128xf32>
    %10 = arith.addf %8, %9 : vector<16x128xf32>
    %11 = arith.mulf %8, %10 : vector<16x128xf32>
    %12 = arith.mulf %5, %11 : vector<16x128xf32>
    %cst_7 = arith.constant 2.000000e+00 : f32
    %13 = vector.broadcast %cst_7 : f32 to vector<16x128xf32>
    %14 = arith.addf %11, %13 : vector<16x128xf32>
    %15 = tpu.reciprocal %14 : vector<16x128xf32> -> vector<16x128xf32>
    %16 = arith.mulf %12, %15 : vector<16x128xf32>
    %c0_8 = arith.constant 0 : index
    %c0_9 = arith.constant 0 : index
    %c0_10 = arith.constant 0 : index
    %17 = vector.load %arg3[%c0_8, %c0_9, %c0_10] : memref<4x16x16xf32, #tpu.memory_space<vmem>>, vector<1x16x16xf32>
    %18 = vector.shape_cast %17 : vector<1x16x16xf32> to vector<16x16xf32>
    %cst_11 = arith.constant dense<0.000000e+00> : vector<16x128xf32>
    %19 = tpu.matmul %18, %16, %cst_11 {dimension_numbers = #tpu.dot_dimension_numbers<[1], [0], [0], [1], [0, 0, 1, 1], [], []>} : vector<16x16xf32>, vector<16x128xf32>, vector<16x128xf32> -> vector<16x128xf32>
    %c0_12 = arith.constant 0 : index
    %c1 = arith.constant 1 : index
    %20 = vector.load %arg4[%c0_12, %c1] : memref<16x5xf32, #tpu.memory_space<vmem>>, vector<16x1xf32>
    %21 = vector.broadcast %20 : vector<16x1xf32> to vector<16x128xf32>
    %22 = arith.addf %19, %21 : vector<16x128xf32>
    %cst_13 = arith.constant 2.000000e+01 : f32
    %23 = vector.broadcast %cst_13 : f32 to vector<16x128xf32>
    %24 = arith.minimumf %22, %23 : vector<16x128xf32>
    %25 = math.exp %24 : vector<16x128xf32>
    %cst_14 = arith.constant 2.000000e+00 : f32
    %26 = vector.broadcast %cst_14 : f32 to vector<16x128xf32>
    %27 = arith.addf %25, %26 : vector<16x128xf32>
    %28 = arith.mulf %25, %27 : vector<16x128xf32>
    %29 = arith.mulf %22, %28 : vector<16x128xf32>
    %cst_15 = arith.constant 2.000000e+00 : f32
    %30 = vector.broadcast %cst_15 : f32 to vector<16x128xf32>
    %31 = arith.addf %28, %30 : vector<16x128xf32>
    %32 = tpu.reciprocal %31 : vector<16x128xf32> -> vector<16x128xf32>
    %33 = arith.mulf %29, %32 : vector<16x128xf32>
    %c1_16 = arith.constant 1 : index
    %c0_17 = arith.constant 0 : index
    %c0_18 = arith.constant 0 : index
    %34 = vector.load %arg3[%c1_16, %c0_17, %c0_18] : memref<4x16x16xf32, #tpu.memory_space<vmem>>, vector<1x16x16xf32>
    %35 = vector.shape_cast %34 : vector<1x16x16xf32> to vector<16x16xf32>
    %cst_19 = arith.constant dense<0.000000e+00> : vector<16x128xf32>
    %36 = tpu.matmul %35, %33, %cst_19 {dimension_numbers = #tpu.dot_dimension_numbers<[1], [0], [0], [1], [0, 0, 1, 1], [], []>} : vector<16x16xf32>, vector<16x128xf32>, vector<16x128xf32> -> vector<16x128xf32>
    %c0_20 = arith.constant 0 : index
    %c2 = arith.constant 2 : index
    %37 = vector.load %arg4[%c0_20, %c2] : memref<16x5xf32, #tpu.memory_space<vmem>>, vector<16x1xf32>
    %38 = vector.broadcast %37 : vector<16x1xf32> to vector<16x128xf32>
    %39 = arith.addf %36, %38 : vector<16x128xf32>
    %cst_21 = arith.constant 2.000000e+01 : f32
    %40 = vector.broadcast %cst_21 : f32 to vector<16x128xf32>
    %41 = arith.minimumf %39, %40 : vector<16x128xf32>
    %42 = math.exp %41 : vector<16x128xf32>
    %cst_22 = arith.constant 2.000000e+00 : f32
    %43 = vector.broadcast %cst_22 : f32 to vector<16x128xf32>
    %44 = arith.addf %42, %43 : vector<16x128xf32>
    %45 = arith.mulf %42, %44 : vector<16x128xf32>
    %46 = arith.mulf %39, %45 : vector<16x128xf32>
    %cst_23 = arith.constant 2.000000e+00 : f32
    %47 = vector.broadcast %cst_23 : f32 to vector<16x128xf32>
    %48 = arith.addf %45, %47 : vector<16x128xf32>
    %49 = tpu.reciprocal %48 : vector<16x128xf32> -> vector<16x128xf32>
    %50 = arith.mulf %46, %49 : vector<16x128xf32>
    %c2_24 = arith.constant 2 : index
    %c0_25 = arith.constant 0 : index
    %c0_26 = arith.constant 0 : index
    %51 = vector.load %arg3[%c2_24, %c0_25, %c0_26] : memref<4x16x16xf32, #tpu.memory_space<vmem>>, vector<1x16x16xf32>
    %52 = vector.shape_cast %51 : vector<1x16x16xf32> to vector<16x16xf32>
    %cst_27 = arith.constant dense<0.000000e+00> : vector<16x128xf32>
    %53 = tpu.matmul %52, %50, %cst_27 {dimension_numbers = #tpu.dot_dimension_numbers<[1], [0], [0], [1], [0, 0, 1, 1], [], []>} : vector<16x16xf32>, vector<16x128xf32>, vector<16x128xf32> -> vector<16x128xf32>
    %c0_28 = arith.constant 0 : index
    %c3 = arith.constant 3 : index
    %54 = vector.load %arg4[%c0_28, %c3] : memref<16x5xf32, #tpu.memory_space<vmem>>, vector<16x1xf32>
    %55 = vector.broadcast %54 : vector<16x1xf32> to vector<16x128xf32>
    %56 = arith.addf %53, %55 : vector<16x128xf32>
    %cst_29 = arith.constant 2.000000e+01 : f32
    %57 = vector.broadcast %cst_29 : f32 to vector<16x128xf32>
    %58 = arith.minimumf %56, %57 : vector<16x128xf32>
    %59 = math.exp %58 : vector<16x128xf32>
    %cst_30 = arith.constant 2.000000e+00 : f32
    %60 = vector.broadcast %cst_30 : f32 to vector<16x128xf32>
    %61 = arith.addf %59, %60 : vector<16x128xf32>
    %62 = arith.mulf %59, %61 : vector<16x128xf32>
    %63 = arith.mulf %56, %62 : vector<16x128xf32>
    %cst_31 = arith.constant 2.000000e+00 : f32
    %64 = vector.broadcast %cst_31 : f32 to vector<16x128xf32>
    %65 = arith.addf %62, %64 : vector<16x128xf32>
    %66 = tpu.reciprocal %65 : vector<16x128xf32> -> vector<16x128xf32>
    %67 = arith.mulf %63, %66 : vector<16x128xf32>
    %c3_32 = arith.constant 3 : index
    %c0_33 = arith.constant 0 : index
    %c0_34 = arith.constant 0 : index
    %68 = vector.load %arg3[%c3_32, %c0_33, %c0_34] : memref<4x16x16xf32, #tpu.memory_space<vmem>>, vector<1x16x16xf32>
    %69 = vector.shape_cast %68 : vector<1x16x16xf32> to vector<16x16xf32>
    %cst_35 = arith.constant dense<0.000000e+00> : vector<16x128xf32>
    %70 = tpu.matmul %69, %67, %cst_35 {dimension_numbers = #tpu.dot_dimension_numbers<[1], [0], [0], [1], [0, 0, 1, 1], [], []>} : vector<16x16xf32>, vector<16x128xf32>, vector<16x128xf32> -> vector<16x128xf32>
    %c0_36 = arith.constant 0 : index
    %c4 = arith.constant 4 : index
    %71 = vector.load %arg4[%c0_36, %c4] : memref<16x5xf32, #tpu.memory_space<vmem>>, vector<16x1xf32>
    %72 = vector.broadcast %71 : vector<16x1xf32> to vector<16x128xf32>
    %73 = arith.addf %70, %72 : vector<16x128xf32>
    %cst_37 = arith.constant 2.000000e+01 : f32
    %74 = vector.broadcast %cst_37 : f32 to vector<16x128xf32>
    %75 = arith.minimumf %73, %74 : vector<16x128xf32>
    %76 = math.exp %75 : vector<16x128xf32>
    %cst_38 = arith.constant 2.000000e+00 : f32
    %77 = vector.broadcast %cst_38 : f32 to vector<16x128xf32>
    %78 = arith.addf %76, %77 : vector<16x128xf32>
    %79 = arith.mulf %76, %78 : vector<16x128xf32>
    %80 = arith.mulf %73, %79 : vector<16x128xf32>
    %cst_39 = arith.constant 2.000000e+00 : f32
    %81 = vector.broadcast %cst_39 : f32 to vector<16x128xf32>
    %82 = arith.addf %79, %81 : vector<16x128xf32>
    %83 = tpu.reciprocal %82 : vector<16x128xf32> -> vector<16x128xf32>
    %84 = arith.mulf %80, %83 : vector<16x128xf32>
    %c0_40 = arith.constant 0 : index
    %c0_41 = arith.constant 0 : index
    %85 = vector.load %arg5[%c0_40, %c0_41] : memref<1x16xf32, #tpu.memory_space<vmem>>, vector<1x16xf32>
    %cst_42 = arith.constant dense<0.000000e+00> : vector<1x128xf32>
    %86 = tpu.matmul %85, %84, %cst_42 {dimension_numbers = #tpu.dot_dimension_numbers<[1], [0], [0], [1], [0, 0, 1, 1], [], []>} : vector<1x16xf32>, vector<16x128xf32>, vector<1x128xf32> -> vector<1x128xf32>
    %c0_43 = arith.constant 0 : index
    %c0_44 = arith.constant 0 : index
    %87 = vector.load %arg6[%c0_43, %c0_44] : memref<1x1xf32, #tpu.memory_space<vmem>>, vector<1x1xf32>
    %88 = vector.broadcast %87 : vector<1x1xf32> to vector<1x128xf32>
    %89 = arith.addf %86, %88 : vector<1x128xf32>
    %c0_45 = arith.constant 0 : index
    %c0_46 = arith.constant 0 : index
    %90 = vector.load %arg7[%c0_45, %c0_46] : memref<1x128xf32, #tpu.memory_space<vmem>>, vector<1x128xf32>
    tpu.vector_store %arg7[%c0_45, %c0_46], %89 {strides = array<i32>} : memref<1x128xf32, #tpu.memory_space<vmem>>, vector<1x128xf32>,
    return
  }
  func.func @transform_0(%arg0: i32) -> (i32, i32) {
    %c0_i32 = arith.constant 0 : i32
    %c0_i32_0 = arith.constant 0 : i32
    return %arg0, %c0_i32 : i32, i32
  }
  func.func @transform_1(%arg0: i32) -> (i32, i32) {
    %c0_i32 = arith.constant 0 : i32
    %c0_i32_0 = arith.constant 0 : i32
    %c0_i32_1 = arith.constant 0 : i32
    return %c0_i32, %c0_i32_0 : i32, i32
  }
  func.func @transform_2(%arg0: i32) -> (i32, i32, i32) {
    %c0_i32 = arith.constant 0 : i32
    %c0_i32_0 = arith.constant 0 : i32
    %c0_i32_1 = arith.constant 0 : i32
    %c0_i32_2 = arith.constant 0 : i32
    return %c0_i32, %c0_i32_0, %c0_i32_1 : i32, i32, i32
  }
  func.func @transform_3(%arg0: i32) -> (i32, i32) {
    %c0_i32 = arith.constant 0 : i32
    %c0_i32_0 = arith.constant 0 : i32
    %c0_i32_1 = arith.constant 0 : i32
    return %c0_i32, %c0_i32_0 : i32, i32
  }
  func.func @transform_4(%arg0: i32) -> (i32, i32) {
    %c0_i32 = arith.constant 0 : i32
    %c0_i32_0 = arith.constant 0 : i32
    %c0_i32_1 = arith.constant 0 : i32
    return %c0_i32, %c0_i32_0 : i32, i32
  }
  func.func @transform_5(%arg0: i32) -> (i32, i32) {
    %c0_i32 = arith.constant 0 : i32
    %c0_i32_0 = arith.constant 0 : i32
    %c0_i32_1 = arith.constant 0 : i32
    return %c0_i32, %c0_i32_0 : i32, i32
  }
  func.func @transform_6(%arg0: i32) -> (i32, i32) {
    %c0_i32 = arith.constant 0 : i32
    %c0_i32_0 = arith.constant 0 : i32
    return %c0_i32, %arg0 : i32, i32
  }
}

</mosaic_0001>

<llo_original>
// kernel: tpu_custom_call.1
$region0: #{tpu_custom_call.1}
  #allocation0 [shape = 'u32[]', space=smem, size = 0x4, offset = 0x4, fixed_abs, tag = 'smem constant byte address 0x4 - core index']
  #allocation1 [shape = 'u32[144,128]{1,0:T(1,128)}', space=vmem, size = 0x12000, scoped, tag = 'internal scratch']
  #allocation2 [shape = 'f32[1,1]{1,0:T(1,128)S(1)}', space=vmem, size = 0x200, scoped, tag = 'scoped memory for tpu_custom_call.1']
  %s0 = inlined_call_operand.vmem [shape: f32[128,32], index: 0, kind: input, shape index: {}]
  %s1 = inlined_call_operand.vmem [shape: f32[16,32], index: 1, kind: input, shape index: {}]
  %s2 = inlined_call_operand.vmem [shape: f32[4,16,16], index: 2, kind: input, shape index: {}]
  %s3 = inlined_call_operand.vmem [shape: f32[16,5], index: 3, kind: input, shape index: {}]
  %s4 = inlined_call_operand.vmem [shape: f32[1,16], index: 4, kind: input, shape index: {}]
  %s5 = inlined_call_operand.<no memory space> [shape: f32[1,1], index: 5, kind: input, shape index: {}]
  %s6 = inlined_call_operand.hbm [shape: f32[1,128], index: 6, kind: output, shape index: {}]
  %s7 = sld [smem:[#allocation0]]
  $region34: #{tpu_custom_call.1} parent=0
    _
  %s9 = ssub.s32 1, %s7
  %s10 = scalar_select 0, %s9, %s7
  %v11 = vstv %s5
  %12 = vst [vmem:[#allocation2] sm:$0x1] %v11
  $region1: #{tpu_custom_call.1} parent=0
    #allocation3 [shape = 'u8[512]{0}', space=vmem, size = 0x400, scoped, tag = 'output window, operand 0, single buffered']
    #allocation4 [shape = 's32[1]{0}', space=sflag, size = 0x4, scoped, tag = 'scoped memory for tpu_custom_call.1']
    %13 = vsyncpa [#allocation4], 0
    // Predicated region
    $region2: #{tpu_custom_call.1} parent=1 // pred_check
      _
    $region3: #{tpu_custom_call.1} parent=1 // pred_check_branch
      %15 = sbr.rel (0) target = $region5
    $region4: #{tpu_custom_call.1} parent=1 // pred_region
      _
    $region5: #{tpu_custom_call.1} parent=1 // pred_fallthru
      _
    // Predicated region
    $region6: #{tpu_custom_call.1} parent=1 // pred_check
      _
    $region7: #{tpu_custom_call.1} parent=1 // pred_check_branch
      %17 = sbr.rel (0) target = $region9
    $region8: #{tpu_custom_call.1} parent=1 // pred_region
      _
    $region9: #{tpu_custom_call.1} parent=1 // pred_fallthru
      _
    // Predicated region
    $region10: #{tpu_custom_call.1} parent=1 // pred_check
      _
    $region11: #{tpu_custom_call.1} parent=1 // pred_check_branch
      %19 = sbr.rel (0) target = $region13
    $region12: #{tpu_custom_call.1} parent=1 // pred_region
      _
    $region13: #{tpu_custom_call.1} parent=1 // pred_fallthru
      _
    // Predicated region
    $region14: #{tpu_custom_call.1} parent=1 // pred_check
      _
    $region15: #{tpu_custom_call.1} parent=1 // pred_check_branch
      %21 = sbr.rel (0) target = $region17
    $region16: #{tpu_custom_call.1} parent=1 // pred_region
      _
    $region17: #{tpu_custom_call.1} parent=1 // pred_fallthru
      _
    // Predicated region
    $region18: #{tpu_custom_call.1} parent=1 // pred_check
      _
    $region19: #{tpu_custom_call.1} parent=1 // pred_check_branch
      %23 = sbr.rel (0) target = $region21
    $region20: #{tpu_custom_call.1} parent=1 // pred_region
      _
    $region21: #{tpu_custom_call.1} parent=1 // pred_fallthru
      _
    // Predicated region
    $region22: #{tpu_custom_call.1} parent=1 // pred_check
      _
    $region23: #{tpu_custom_call.1} parent=1 // pred_check_branch
      %25 = sbr.rel (0) target = $region25
    $region24: #{tpu_custom_call.1} parent=1 // pred_region
      _
    $region25: #{tpu_custom_call.1} parent=1 // pred_fallthru
      _
    %v26 = vld [vmem:[%s0] sm:$0xff]
    %v27 = vld [vmem:[%s0 + $0x8] sm:$0xff]
    %v28 = vld [vmem:[%s0 + $0x10] sm:$0xff]
    %v29 = vld [vmem:[%s0 + $0x18] sm:$0xff]
    %v30 = vld [vmem:[%s0 + $0x20] sm:$0xff]
    %v31 = vld [vmem:[%s0 + $0x28] sm:$0xff]
    %v32 = vld [vmem:[%s0 + $0x30] sm:$0xff]
    %v33 = vld [vmem:[%s0 + $0x38] sm:$0xff]
    %v34 = vld [vmem:[%s0 + $0x40] sm:$0xff]
    %v35 = vld [vmem:[%s0 + $0x48] sm:$0xff]
    %v36 = vld [vmem:[%s0 + $0x50] sm:$0xff]
    %v37 = vld [vmem:[%s0 + $0x58] sm:$0xff]
    %v38 = vld [vmem:[%s0 + $0x60] sm:$0xff]
    %v39 = vld [vmem:[%s0 + $0x68] sm:$0xff]
    %v40 = vld [vmem:[%s0 + $0x70] sm:$0xff]
    %v41 = vld [vmem:[%s0 + $0x78] sm:$0xff]
    %v42 = vld [vmem:[%s1] sm:$0xff]
    %v43 = vld [vmem:[%s1 + $0x8] sm:$0xff]
    %v44 = vld [vmem:[%s3] sm:$0xff]
    %v45 = vld [vmem:[%s3 + $0x8] sm:$0xff]
    %47 = vset.pattern.permute.xlu0 0
    %48 = vperm.xlu0 %47, %v44
    %v49 = vpop.permute.xlu0 %48
    %52 = vset.pattern.permute.xlu0 0
    %53 = vperm.xlu0 %52, %v45
    %v54 = vpop.permute.xlu0 %53
    %vm56 = vcmask 261120
    %v58 = vsel %vm56, %v42, 0
    %v61 = vsel %vm56, %v43, 0
    %v64 = vsel %vm56, %v26, 0
    %v67 = vsel %vm56, %v27, 0
    %v70 = vsel %vm56, %v28, 0
    %v73 = vsel %vm56, %v29, 0
    %v76 = vsel %vm56, %v30, 0
    %v79 = vsel %vm56, %v31, 0
    %v82 = vsel %vm56, %v32, 0
    %v85 = vsel %vm56, %v33, 0
    %v88 = vsel %vm56, %v34, 0
    %v91 = vsel %vm56, %v35, 0
    %v94 = vsel %vm56, %v36, 0
    %v97 = vsel %vm56, %v37, 0
    %v100 = vsel %vm56, %v38, 0
    %v103 = vsel %vm56, %v39, 0
    %v106 = vsel %vm56, %v40, 0
    %v109 = vsel %vm56, %v41, 0
    %111 = vmatprep.subr.mxu0 0.0
    %112 = vmatpush1.xpose.msra.mxu0 %v109
    %113 = vmatprep.subr.mxu0 0.0
    %114 = vmatpush1.xpose.msra.mxu0 %v106
    %115 = vmatprep.subr.mxu0 0.0
    %116 = vmatpush1.xpose.msra.mxu0 %v103
    %117 = vmatprep.subr.mxu0 0.0
    %118 = vmatpush1.xpose.msra.mxu0 %v100
    %119 = vmatprep.subr.mxu0 0.0
    %120 = vmatpush1.xpose.msra.mxu0 %v97
    %121 = vmatprep.subr.mxu0 0.0
    %122 = vmatpush1.xpose.msra.mxu0 %v94
    %123 = vmatprep.subr.mxu0 0.0
    %124 = vmatpush1.xpose.msra.mxu0 %v91
    %125 = vmatprep.subr.mxu0 0.0
    %126 = vmatpush1.xpose.msra.mxu0 %v88
    %127 = vmatprep.subr.mxu0 0.0
    %128 = vmatpush1.xpose.msra.mxu0 %v85
    %129 = vmatprep.subr.mxu0 0.0
    %130 = vmatpush1.xpose.msra.mxu0 %v82
    %131 = vmatprep.subr.mxu0 0.0
    %132 = vmatpush1.xpose.msra.mxu0 %v79
    %133 = vmatprep.subr.mxu0 0.0
    %134 = vmatpush1.xpose.msra.mxu0 %v76
    %135 = vmatprep.subr.mxu0 0.0
    %136 = vmatpush1.xpose.msra.mxu0 %v73
    %137 = vmatprep.subr.mxu0 0.0
    %138 = vmatpush1.xpose.msra.mxu0 %v70
    %139 = vmatprep.subr.mxu0 0.0
    %140 = vmatpush1.xpose.msra.mxu0 %v67
    %141 = vmatprep.subr.mxu0 0.0
    %142 = vmatpush1.xpose.msra.mxu0 %v64
    %143 = vmatprep.subr.mxu0 0.0
    %144 = vmatpush2.xpose.msra.mxu0 0.0
    %145 = vmatprep.subr.mxu0 0.0
    %146 = vmatpush2.xpose.msra.mxu0 0.0
    %147 = vmatprep.subr.mxu0 0.0
    %148 = vmatpush2.xpose.msra.mxu0 0.0
    %149 = vmatprep.subr.mxu0 0.0
    %150 = vmatpush2.xpose.msra.mxu0 0.0
    %151 = vmatprep.subr.mxu0 0.0
    %152 = vmatpush2.xpose.msra.mxu0 0.0
    %153 = vmatprep.subr.mxu0 0.0
    %154 = vmatpush2.xpose.msra.mxu0 0.0
    %155 = vmatprep.subr.mxu0 0.0
    %156 = vmatpush2.xpose.msra.mxu0 0.0
    %157 = vmatprep.subr.mxu0 0.0
    %158 = vmatpush2.xpose.msra.mxu0 0.0
    %159 = vmatprep.subr.mxu0 0.0
    %160 = vmatpush2.xpose.msra.mxu0 0.0
    %161 = vmatprep.subr.mxu0 0.0
    %162 = vmatpush2.xpose.msra.mxu0 0.0
    %163 = vmatprep.subr.mxu0 0.0
    %164 = vmatpush2.xpose.msra.mxu0 0.0
    %165 = vmatprep.subr.mxu0 0.0
    %166 = vmatpush2.xpose.msra.mxu0 0.0
    %167 = vmatprep.subr.mxu0 0.0
    %168 = vmatpush2.xpose.msra.mxu0 0.0
    %169 = vmatprep.subr.mxu0 0.0
    %170 = vmatpush2.xpose.msra.mxu0 0.0
    %171 = vmatprep.subr.mxu0 0.0
    %172 = vmatpush2.xpose.msra.mxu0 0.0
    %173 = vmatprep.subr.mxu0 0.0
    %174 = vmatpush2.xpose.msra.mxu0 0.0
    %175 = vmatprep.mubr.f32.mxu0 0.0
    %176 = vmatmul.mubr.f32.gmra.mxu0 %v58
    %v177 = vpop.f32.mrf.mxu0
    %v178 = vadd.f32 %v49, %v177
    %v179 = vpop.f32.mrf.mxu0
    %180 = vmatprep.mubr.f32.mxu0 0.0
    %181 = vmatmul.mubr.f32.gmra.mxu0 %v61
    %v182 = vpop.f32.mrf.mxu0
    %v183 = vadd.f32 %v54, %v182
    %v184 = vpop.f32.mrf.mxu0
    %185 = vdwg.mxu0
    %v186 = vmin.f32 %v178, 20.0
    %v187 = vmin.f32 %v183, 20.0
    %v188 = vmul.f32 %v186, 1.442695
    %v189 = vpow.pop %v188
    %v190 = vmul.f32 %v187, 1.442695
    %v191 = vpow.pop %v190
    %v192 = vadd.f32 %v189, 2.0
    %v193 = vadd.f32 %v191, 2.0
    %v194 = vmul.f32 %v189, %v192
    %v195 = vmul.f32 %v191, %v193
    %v196 = vmul.f32 %v178, %v194
    %v197 = vmul.f32 %v183, %v195
    %v198 = vadd.f32 %v194, 2.0
    %v199 = vadd.f32 %v195, 2.0
    %v200 = vrcp.pop %v198
    %v201 = vrcp.pop %v199
    %v202 = vmul.f32 %v196, %v200
    %v203 = vmul.f32 %v197, %v201
    %v204 = vld [vmem:[%s2] sm:$0xff]
    %v205 = vld [vmem:[%s2 + $0x8] sm:$0xff]
    %206 = vset.pattern.permute.xlu0 1
    %207 = vperm.xlu0 %206, %v44
    %v208 = vpop.permute.xlu0 %207
    %210 = vset.pattern.permute.xlu0 1
    %211 = vperm.xlu0 %210, %v45
    %v212 = vpop.permute.xlu0 %211
    %vm214 = vcmask 130048
    %v216 = vsel %vm214, %v204, 0
    %v219 = vsel %vm214, %v205, 0
    %221 = vmatprep.subr.mxu0 0.0
    %222 = vmatpush1.msra.mxu0 0.0
    %223 = vmatprep.subr.mxu0 0.0
    %224 = vmatpush1.msra.mxu0 0.0
    %225 = vmatprep.subr.mxu0 0.0
    %226 = vmatpush1.msra.mxu0 0.0
    %227 = vmatprep.subr.mxu0 0.0
    %228 = vmatpush1.msra.mxu0 0.0
    %229 = vmatprep.subr.mxu0 0.0
    %230 = vmatpush1.msra.mxu0 0.0
    %231 = vmatprep.subr.mxu0 0.0
    %232 = vmatpush1.msra.mxu0 0.0
    %233 = vmatprep.subr.mxu0 0.0
    %234 = vmatpush1.msra.mxu0 0.0
    %235 = vmatprep.subr.mxu0 0.0
    %236 = vmatpush1.msra.mxu0 0.0
    %237 = vmatprep.subr.mxu0 0.0
    %238 = vmatpush1.msra.mxu0 0.0
    %239 = vmatprep.subr.mxu0 0.0
    %240 = vmatpush1.msra.mxu0 0.0
    %241 = vmatprep.subr.mxu0 0.0
    %242 = vmatpush1.msra.mxu0 0.0
    %243 = vmatprep.subr.mxu0 0.0
    %244 = vmatpush1.msra.mxu0 0.0
    %245 = vmatprep.subr.mxu0 0.0
    %246 = vmatpush1.msra.mxu0 0.0
    %247 = vmatprep.subr.mxu0 0.0
    %248 = vmatpush1.msra.mxu0 0.0
    %249 = vmatprep.subr.mxu0 0.0
    %250 = vmatpush1.msra.mxu0 %v203
    %251 = vmatprep.subr.mxu0 0.0
    %252 = vmatpush1.msra.mxu0 %v202
    %253 = vmatprep.subr.mxu0 0.0
    %254 = vmatpush2.msra.mxu0 0.0
    %255 = vmatprep.subr.mxu0 0.0
    %256 = vmatpush2.msra.mxu0 0.0
    %257 = vmatprep.subr.mxu0 0.0
    %258 = vmatpush2.msra.mxu0 0.0
    %259 = vmatprep.subr.mxu0 0.0
    %260 = vmatpush2.msra.mxu0 0.0
    %261 = vmatprep.subr.mxu0 0.0
    %262 = vmatpush2.msra.mxu0 0.0
    %263 = vmatprep.subr.mxu0 0.0
    %264 = vmatpush2.msra.mxu0 0.0
    %265 = vmatprep.subr.mxu0 0.0
    %266 = vmatpush2.msra.mxu0 0.0
    %267 = vmatprep.subr.mxu0 0.0
    %268 = vmatpush2.msra.mxu0 0.0
    %269 = vmatprep.subr.mxu0 0.0
    %270 = vmatpush2.msra.mxu0 0.0
    %271 = vmatprep.subr.mxu0 0.0
    %272 = vmatpush2.msra.mxu0 0.0
    %273 = vmatprep.subr.mxu0 0.0
    %274 = vmatpush2.msra.mxu0 0.0
    %275 = vmatprep.subr.mxu0 0.0
    %276 = vmatpush2.msra.mxu0 0.0
    %277 = vmatprep.subr.mxu0 0.0
    %278 = vmatpush2.msra.mxu0 0.0
    %279 = vmatprep.subr.mxu0 0.0
    %280 = vmatpush2.msra.mxu0 0.0
    %281 = vmatprep.subr.mxu0 0.0
    %282 = vmatpush2.msra.mxu0 0.0
    %283 = vmatprep.subr.mxu0 0.0
    %284 = vmatpush2.msra.mxu0 0.0
    %285 = vmatprep.mubr.f32.mxu0 0.0
    %286 = vmatmul.mubr.f32.gmra.mxu0 %v216
    %v287 = vpop.f32.mrf.mxu0
    %v288 = vadd.f32 %v208, %v287
    %v289 = vpop.f32.mrf.mxu0
    %290 = vmatprep.mubr.f32.mxu0 0.0
    %291 = vmatmul.mubr.f32.gmra.mxu0 %v219
    %v292 = vpop.f32.mrf.mxu0
    %v293 = vadd.f32 %v212, %v292
    %v294 = vpop.f32.mrf.mxu0
    %295 = vdwg.mxu0
    %v296 = vmin.f32 %v288, 20.0
    %v297 = vmin.f32 %v293, 20.0
    %v298 = vmul.f32 %v296, 1.442695
    %v299 = vpow.pop %v298
    %v300 = vmul.f32 %v297, 1.442695
    %v301 = vpow.pop %v300
    %v302 = vadd.f32 %v299, 2.0
    %v303 = vadd.f32 %v301, 2.0
    %v304 = vmul.f32 %v299, %v302
    %v305 = vmul.f32 %v301, %v303
    %v306 = vmul.f32 %v288, %v304
    %v307 = vmul.f32 %v293, %v305
    %v308 = vadd.f32 %v304, 2.0
    %v309 = vadd.f32 %v305, 2.0
    %v310 = vrcp.pop %v308
    %v311 = vrcp.pop %v309
    %v312 = vmul.f32 %v306, %v310
    %v313 = vmul.f32 %v307, %v311
    %s314 = scalar_lea.vmem %s2, 16
    %v315 = vld [vmem:[%s314] sm:$0xff]
    %v316 = vld [vmem:[%s314 + $0x8] sm:$0xff]
    %317 = vset.pattern.permute.xlu0 2
    %318 = vperm.xlu0 %317, %v44
    %v319 = vpop.permute.xlu0 %318
    %321 = vset.pattern.permute.xlu0 2
    %322 = vperm.xlu0 %321, %v45
    %v323 = vpop.permute.xlu0 %322
    %v326 = vsel %vm214, %v315, 0
    %v329 = vsel %vm214, %v316, 0
    %331 = vmatprep.subr.mxu0 0.0
    %332 = vmatpush1.msra.mxu0 0.0
    %333 = vmatprep.subr.mxu0 0.0
    %334 = vmatpush1.msra.mxu0 0.0
    %335 = vmatprep.subr.mxu0 0.0
    %336 = vmatpush1.msra.mxu0 0.0
    %337 = vmatprep.subr.mxu0 0.0
    %338 = vmatpush1.msra.mxu0 0.0
    %339 = vmatprep.subr.mxu0 0.0
    %340 = vmatpush1.msra.mxu0 0.0
    %341 = vmatprep.subr.mxu0 0.0
    %342 = vmatpush1.msra.mxu0 0.0
    %343 = vmatprep.subr.mxu0 0.0
    %344 = vmatpush1.msra.mxu0 0.0
    %345 = vmatprep.subr.mxu0 0.0
    %346 = vmatpush1.msra.mxu0 0.0
    %347 = vmatprep.subr.mxu0 0.0
    %348 = vmatpush1.msra.mxu0 0.0
    %349 = vmatprep.subr.mxu0 0.0
    %350 = vmatpush1.msra.mxu0 0.0
    %351 = vmatprep.subr.mxu0 0.0
    %352 = vmatpush1.msra.mxu0 0.0
    %353 = vmatprep.subr.mxu0 0.0
    %354 = vmatpush1.msra.mxu0 0.0
    %355 = vmatprep.subr.mxu0 0.0
    %356 = vmatpush1.msra.mxu0 0.0
    %357 = vmatprep.subr.mxu0 0.0
    %358 = vmatpush1.msra.mxu0 0.0
    %359 = vmatprep.subr.mxu0 0.0
    %360 = vmatpush1.msra.mxu0 %v313
    %361 = vmatprep.subr.mxu0 0.0
    %362 = vmatpush1.msra.mxu0 %v312
    %363 = vmatprep.subr.mxu0 0.0
    %364 = vmatpush2.msra.mxu0 0.0
    %365 = vmatprep.subr.mxu0 0.0
    %366 = vmatpush2.msra.mxu0 0.0
    %367 = vmatprep.subr.mxu0 0.0
    %368 = vmatpush2.msra.mxu0 0.0
    %369 = vmatprep.subr.mxu0 0.0
    %370 = vmatpush2.msra.mxu0 0.0
    %371 = vmatprep.subr.mxu0 0.0
    %372 = vmatpush2.msra.mxu0 0.0
    %373 = vmatprep.subr.mxu0 0.0
    %374 = vmatpush2.msra.mxu0 0.0
    %375 = vmatprep.subr.mxu0 0.0
    %376 = vmatpush2.msra.mxu0 0.0
    %377 = vmatprep.subr.mxu0 0.0
    %378 = vmatpush2.msra.mxu0 0.0
    %379 = vmatprep.subr.mxu0 0.0
    %380 = vmatpush2.msra.mxu0 0.0
    %381 = vmatprep.subr.mxu0 0.0
    %382 = vmatpush2.msra.mxu0 0.0
    %383 = vmatprep.subr.mxu0 0.0
    %384 = vmatpush2.msra.mxu0 0.0
    %385 = vmatprep.subr.mxu0 0.0
    %386 = vmatpush2.msra.mxu0 0.0
    %387 = vmatprep.subr.mxu0 0.0
    %388 = vmatpush2.msra.mxu0 0.0
    %389 = vmatprep.subr.mxu0 0.0
    %390 = vmatpush2.msra.mxu0 0.0
    %391 = vmatprep.subr.mxu0 0.0
    %392 = vmatpush2.msra.mxu0 0.0
    %393 = vmatprep.subr.mxu0 0.0
    %394 = vmatpush2.msra.mxu0 0.0
    %395 = vmatprep.mubr.f32.mxu0 0.0
    %396 = vmatmul.mubr.f32.gmra.mxu0 %v326
    %v397 = vpop.f32.mrf.mxu0
    %v398 = vadd.f32 %v319, %v397
    %v399 = vpop.f32.mrf.mxu0
    %400 = vmatprep.mubr.f32.mxu0 0.0
    %401 = vmatmul.mubr.f32.gmra.mxu0 %v329
    %v402 = vpop.f32.mrf.mxu0
    %v403 = vadd.f32 %v323, %v402
    %v404 = vpop.f32.mrf.mxu0
    %405 = vdwg.mxu0
    %v406 = vmin.f32 %v398, 20.0
    %v407 = vmin.f32 %v403, 20.0
    %v408 = vmul.f32 %v406, 1.442695
    %v409 = vpow.pop %v408
    %v410 = vmul.f32 %v407, 1.442695
    %v411 = vpow.pop %v410
    %v412 = vadd.f32 %v409, 2.0
    %v413 = vadd.f32 %v411, 2.0
    %v414 = vmul.f32 %v409, %v412
    %v415 = vmul.f32 %v411, %v413
    %v416 = vmul.f32 %v398, %v414
    %v417 = vmul.f32 %v403, %v415
    %v418 = vadd.f32 %v414, 2.0
    %v419 = vadd.f32 %v415, 2.0
    %v420 = vrcp.pop %v418
    %v421 = vrcp.pop %v419
    %v422 = vmul.f32 %v416, %v420
    %v423 = vmul.f32 %v417, %v421
    %s424 = scalar_lea.vmem %s2, 32
    %v425 = vld [vmem:[%s424] sm:$0xff]
    %v426 = vld [vmem:[%s424 + $0x8] sm:$0xff]
    %427 = vset.pattern.permute.xlu0 3
    %428 = vperm.xlu0 %427, %v44
    %v429 = vpop.permute.xlu0 %428
    %431 = vset.pattern.permute.xlu0 3
    %432 = vperm.xlu0 %431, %v45
    %v433 = vpop.permute.xlu0 %432
    %v436 = vsel %vm214, %v425, 0
    %v439 = vsel %vm214, %v426, 0
    %441 = vmatprep.subr.mxu0 0.0
    %442 = vmatpush1.msra.mxu0 0.0
    %443 = vmatprep.subr.mxu0 0.0
    %444 = vmatpush1.msra.mxu0 0.0
    %445 = vmatprep.subr.mxu0 0.0
    %446 = vmatpush1.msra.mxu0 0.0
    %447 = vmatprep.subr.mxu0 0.0
    %448 = vmatpush1.msra.mxu0 0.0
    %449 = vmatprep.subr.mxu0 0.0
    %450 = vmatpush1.msra.mxu0 0.0
    %451 = vmatprep.subr.mxu0 0.0
    %452 = vmatpush1.msra.mxu0 0.0
    %453 = vmatprep.subr.mxu0 0.0
    %454 = vmatpush1.msra.mxu0 0.0
    %455 = vmatprep.subr.mxu0 0.0
    %456 = vmatpush1.msra.mxu0 0.0
    %457 = vmatprep.subr.mxu0 0.0
    %458 = vmatpush1.msra.mxu0 0.0
    %459 = vmatprep.subr.mxu0 0.0
    %460 = vmatpush1.msra.mxu0 0.0
    %461 = vmatprep.subr.mxu0 0.0
    %462 = vmatpush1.msra.mxu0 0.0
    %463 = vmatprep.subr.mxu0 0.0
    %464 = vmatpush1.msra.mxu0 0.0
    %465 = vmatprep.subr.mxu0 0.0
    %466 = vmatpush1.msra.mxu0 0.0
    %467 = vmatprep.subr.mxu0 0.0
    %468 = vmatpush1.msra.mxu0 0.0
    %469 = vmatprep.subr.mxu0 0.0
    %470 = vmatpush1.msra.mxu0 %v423
    %471 = vmatprep.subr.mxu0 0.0
    %472 = vmatpush1.msra.mxu0 %v422
    %473 = vmatprep.subr.mxu0 0.0
    %474 = vmatpush2.msra.mxu0 0.0
    %475 = vmatprep.subr.mxu0 0.0
    %476 = vmatpush2.msra.mxu0 0.0
    %477 = vmatprep.subr.mxu0 0.0
    %478 = vmatpush2.msra.mxu0 0.0
    %479 = vmatprep.subr.mxu0 0.0
    %480 = vmatpush2.msra.mxu0 0.0
    %481 = vmatprep.subr.mxu0 0.0
    %482 = vmatpush2.msra.mxu0 0.0
    %483 = vmatprep.subr.mxu0 0.0
    %484 = vmatpush2.msra.mxu0 0.0
    %485 = vmatprep.subr.mxu0 0.0
    %486 = vmatpush2.msra.mxu0 0.0
    %487 = vmatprep.subr.mxu0 0.0
    %488 = vmatpush2.msra.mxu0 0.0
    %489 = vmatprep.subr.mxu0 0.0
    %490 = vmatpush2.msra.mxu0 0.0
    %491 = vmatprep.subr.mxu0 0.0
    %492 = vmatpush2.msra.mxu0 0.0
    %493 = vmatprep.subr.mxu0 0.0
    %494 = vmatpush2.msra.mxu0 0.0
    %495 = vmatprep.subr.mxu0 0.0
    %496 = vmatpush2.msra.mxu0 0.0
    %497 = vmatprep.subr.mxu0 0.0
    %498 = vmatpush2.msra.mxu0 0.0
    %499 = vmatprep.subr.mxu0 0.0
    %500 = vmatpush2.msra.mxu0 0.0
    %501 = vmatprep.subr.mxu0 0.0
    %502 = vmatpush2.msra.mxu0 0.0
    %503 = vmatprep.subr.mxu0 0.0
    %504 = vmatpush2.msra.mxu0 0.0
    %505 = vmatprep.mubr.f32.mxu0 0.0
    %506 = vmatmul.mubr.f32.gmra.mxu0 %v436
    %v507 = vpop.f32.mrf.mxu0
    %v508 = vadd.f32 %v429, %v507
    %v509 = vpop.f32.mrf.mxu0
    %510 = vmatprep.mubr.f32.mxu0 0.0
    %511 = vmatmul.mubr.f32.gmra.mxu0 %v439
    %v512 = vpop.f32.mrf.mxu0
    %v513 = vadd.f32 %v433, %v512
    %v514 = vpop.f32.mrf.mxu0
    %515 = vdwg.mxu0
    %v516 = vmin.f32 %v508, 20.0
    %v517 = vmin.f32 %v513, 20.0
    %v518 = vmul.f32 %v516, 1.442695
    %v519 = vpow.pop %v518
    %v520 = vmul.f32 %v517, 1.442695
    %v521 = vpow.pop %v520
    %v522 = vadd.f32 %v519, 2.0
    %v523 = vadd.f32 %v521, 2.0
    %v524 = vmul.f32 %v519, %v522
    %v525 = vmul.f32 %v521, %v523
    %v526 = vmul.f32 %v508, %v524
    %v527 = vmul.f32 %v513, %v525
    %v528 = vadd.f32 %v524, 2.0
    %v529 = vadd.f32 %v525, 2.0
    %v530 = vrcp.pop %v528
    %v531 = vrcp.pop %v529
    %v532 = vmul.f32 %v526, %v530
    %v533 = vmul.f32 %v527, %v531
    %s534 = scalar_lea.vmem %s2, 48
    %v535 = vld [vmem:[%s534] sm:$0xff]
    %v536 = vld [vmem:[%s534 + $0x8] sm:$0xff]
    %537 = vset.pattern.permute.xlu0 4
    %538 = vperm.xlu0 %537, %v44
    %v539 = vpop.permute.xlu0 %538
    %541 = vset.pattern.permute.xlu0 4
    %542 = vperm.xlu0 %541, %v45
    %v543 = vpop.permute.xlu0 %542
    %v546 = vsel %vm214, %v535, 0
    %v549 = vsel %vm214, %v536, 0
    %551 = vmatprep.subr.mxu0 0.0
    %552 = vmatpush1.msra.mxu0 0.0
    %553 = vmatprep.subr.mxu0 0.0
    %554 = vmatpush1.msra.mxu0 0.0
    %555 = vmatprep.subr.mxu0 0.0
    %556 = vmatpush1.msra.mxu0 0.0
    %557 = vmatprep.subr.mxu0 0.0
    %558 = vmatpush1.msra.mxu0 0.0
    %559 = vmatprep.subr.mxu0 0.0
    %560 = vmatpush1.msra.mxu0 0.0
    %561 = vmatprep.subr.mxu0 0.0
    %562 = vmatpush1.msra.mxu0 0.0
    %563 = vmatprep.subr.mxu0 0.0
    %564 = vmatpush1.msra.mxu0 0.0
    %565 = vmatprep.subr.mxu0 0.0
    %566 = vmatpush1.msra.mxu0 0.0
    %567 = vmatprep.subr.mxu0 0.0
    %568 = vmatpush1.msra.mxu0 0.0
    %569 = vmatprep.subr.mxu0 0.0
    %570 = vmatpush1.msra.mxu0 0.0
    %571 = vmatprep.subr.mxu0 0.0
    %572 = vmatpush1.msra.mxu0 0.0
    %573 = vmatprep.subr.mxu0 0.0
    %574 = vmatpush1.msra.mxu0 0.0
    %575 = vmatprep.subr.mxu0 0.0
    %576 = vmatpush1.msra.mxu0 0.0
    %577 = vmatprep.subr.mxu0 0.0
    %578 = vmatpush1.msra.mxu0 0.0
    %579 = vmatprep.subr.mxu0 0.0
    %580 = vmatpush1.msra.mxu0 %v533
    %581 = vmatprep.subr.mxu0 0.0
    %582 = vmatpush1.msra.mxu0 %v532
    %583 = vmatprep.subr.mxu0 0.0
    %584 = vmatpush2.msra.mxu0 0.0
    %585 = vmatprep.subr.mxu0 0.0
    %586 = vmatpush2.msra.mxu0 0.0
    %587 = vmatprep.subr.mxu0 0.0
    %588 = vmatpush2.msra.mxu0 0.0
    %589 = vmatprep.subr.mxu0 0.0
    %590 = vmatpush2.msra.mxu0 0.0
    %591 = vmatprep.subr.mxu0 0.0
    %592 = vmatpush2.msra.mxu0 0.0
    %593 = vmatprep.subr.mxu0 0.0
    %594 = vmatpush2.msra.mxu0 0.0
    %595 = vmatprep.subr.mxu0 0.0
    %596 = vmatpush2.msra.mxu0 0.0
    %597 = vmatprep.subr.mxu0 0.0
    %598 = vmatpush2.msra.mxu0 0.0
    %599 = vmatprep.subr.mxu0 0.0
    %600 = vmatpush2.msra.mxu0 0.0
    %601 = vmatprep.subr.mxu0 0.0
    %602 = vmatpush2.msra.mxu0 0.0
    %603 = vmatprep.subr.mxu0 0.0
    %604 = vmatpush2.msra.mxu0 0.0
    %605 = vmatprep.subr.mxu0 0.0
    %606 = vmatpush2.msra.mxu0 0.0
    %607 = vmatprep.subr.mxu0 0.0
    %608 = vmatpush2.msra.mxu0 0.0
    %609 = vmatprep.subr.mxu0 0.0
    %610 = vmatpush2.msra.mxu0 0.0
    %611 = vmatprep.subr.mxu0 0.0
    %612 = vmatpush2.msra.mxu0 0.0
    %613 = vmatprep.subr.mxu0 0.0
    %614 = vmatpush2.msra.mxu0 0.0
    %615 = vmatprep.mubr.f32.mxu0 0.0
    %616 = vmatmul.mubr.f32.gmra.mxu0 %v546
    %v617 = vpop.f32.mrf.mxu0
    %v618 = vadd.f32 %v539, %v617
    %v619 = vpop.f32.mrf.mxu0
    %620 = vmatprep.mubr.f32.mxu0 0.0
    %621 = vmatmul.mubr.f32.gmra.mxu0 %v549
    %v622 = vpop.f32.mrf.mxu0
    %v623 = vadd.f32 %v543, %v622
    %v624 = vpop.f32.mrf.mxu0
    %625 = vdwg.mxu0
    %v626 = vmin.f32 %v618, 20.0
    %v627 = vmin.f32 %v623, 20.0
    %v628 = vmul.f32 %v626, 1.442695
    %v629 = vpow.pop %v628
    %v630 = vmul.f32 %v627, 1.442695
    %v631 = vpow.pop %v630
    %v632 = vadd.f32 %v629, 2.0
    %v633 = vadd.f32 %v631, 2.0
    %v634 = vmul.f32 %v629, %v632
    %v635 = vmul.f32 %v631, %v633
    %v636 = vmul.f32 %v618, %v634
    %v637 = vmul.f32 %v623, %v635
    %v638 = vadd.f32 %v634, 2.0
    %v639 = vadd.f32 %v635, 2.0
    %v640 = vrcp.pop %v638
    %v641 = vrcp.pop %v639
    %v642 = vmul.f32 %v636, %v640
    %v643 = vmul.f32 %v637, %v641
    %v644 = vld [vmem:[%s4] sm:$0x1]
    %v645 = vld [vmem:[#allocation2] sm:$0x1]
    %647 = vset.pattern.permute.xlu0 0
    %648 = vperm.xlu0 %647, %v645
    %v649 = vpop.permute.xlu0 %648
    %v651 = vlaneseq
    %v652 = vshrl.u32 %v651, 7
    %v653 = vsub.s32 0, %v652
    %v654 = vrot.slane %v649, %v653
    %v656 = vsel %vm214, %v644, 0
    %658 = vmatprep.subr.mxu0 0.0
    %659 = vmatpush1.msra.mxu0 0.0
    %660 = vmatprep.subr.mxu0 0.0
    %661 = vmatpush1.msra.mxu0 0.0
    %662 = vmatprep.subr.mxu0 0.0
    %663 = vmatpush1.msra.mxu0 0.0
    %664 = vmatprep.subr.mxu0 0.0
    %665 = vmatpush1.msra.mxu0 0.0
    %666 = vmatprep.subr.mxu0 0.0
    %667 = vmatpush1.msra.mxu0 0.0
    %668 = vmatprep.subr.mxu0 0.0
    %669 = vmatpush1.msra.mxu0 0.0
    %670 = vmatprep.subr.mxu0 0.0
    %671 = vmatpush1.msra.mxu0 0.0
    %672 = vmatprep.subr.mxu0 0.0
    %673 = vmatpush1.msra.mxu0 0.0
    %674 = vmatprep.subr.mxu0 0.0
    %675 = vmatpush1.msra.mxu0 0.0
    %676 = vmatprep.subr.mxu0 0.0
    %677 = vmatpush1.msra.mxu0 0.0
    %678 = vmatprep.subr.mxu0 0.0
    %679 = vmatpush1.msra.mxu0 0.0
    %680 = vmatprep.subr.mxu0 0.0
    %681 = vmatpush1.msra.mxu0 0.0
    %682 = vmatprep.subr.mxu0 0.0
    %683 = vmatpush1.msra.mxu0 0.0
    %684 = vmatprep.subr.mxu0 0.0
    %685 = vmatpush1.msra.mxu0 0.0
    %686 = vmatprep.subr.mxu0 0.0
    %687 = vmatpush1.msra.mxu0 %v643
    %688 = vmatprep.subr.mxu0 0.0
    %689 = vmatpush1.msra.mxu0 %v642
    %690 = vmatprep.subr.mxu0 0.0
    %691 = vmatpush2.msra.mxu0 0.0
    %692 = vmatprep.subr.mxu0 0.0
    %693 = vmatpush2.msra.mxu0 0.0
    %694 = vmatprep.subr.mxu0 0.0
    %695 = vmatpush2.msra.mxu0 0.0
    %696 = vmatprep.subr.mxu0 0.0
    %697 = vmatpush2.msra.mxu0 0.0
    %698 = vmatprep.subr.mxu0 0.0
    %699 = vmatpush2.msra.mxu0 0.0
    %700 = vmatprep.subr.mxu0 0.0
    %701 = vmatpush2.msra.mxu0 0.0
    %702 = vmatprep.subr.mxu0 0.0
    %703 = vmatpush2.msra.mxu0 0.0
    %704 = vmatprep.subr.mxu0 0.0
    %705 = vmatpush2.msra.mxu0 0.0
    %706 = vmatprep.subr.mxu0 0.0
    %707 = vmatpush2.msra.mxu0 0.0
    %708 = vmatprep.subr.mxu0 0.0
    %709 = vmatpush2.msra.mxu0 0.0
    %710 = vmatprep.subr.mxu0 0.0
    %711 = vmatpush2.msra.mxu0 0.0
    %712 = vmatprep.subr.mxu0 0.0
    %713 = vmatpush2.msra.mxu0 0.0
    %714 = vmatprep.subr.mxu0 0.0
    %715 = vmatpush2.msra.mxu0 0.0
    %716 = vmatprep.subr.mxu0 0.0
    %717 = vmatpush2.msra.mxu0 0.0
    %718 = vmatprep.subr.mxu0 0.0
    %719 = vmatpush2.msra.mxu0 0.0
    %720 = vmatprep.subr.mxu0 0.0
    %721 = vmatpush2.msra.mxu0 0.0
    %722 = vmatprep.mubr.f32.mxu0 0.0
    %723 = vmatmul.mubr.f32.gmra.mxu0 %v656
    %v724 = vpop.f32.mrf.mxu0
    %v725 = vadd.f32 %v654, %v724
    %v726 = vpop.f32.mrf.mxu0
    %727 = vdwg.mxu0
    %728 = vst [vmem:[#allocation3] sm:$0x1] %v725
    // Predicated region
    $region26: #{tpu_custom_call.1} parent=1 // pred_check
      _
    $region27: #{tpu_custom_call.1} parent=1 // pred_check_branch
      %730 = sbr.rel (0) target = $region29
    $region28: #{tpu_custom_call.1} parent=1 // pred_region
      %s732 = ssub.s32 16, 16
      %733 = vsyncadd [#allocation4], %s732
      %s735 = sshll.u32 [#allocation3], 4
      %s736 = int_to_ptr.vmem [resolvable:$true] %s735
      %738 = dma.vmem_to_hbm [thread:$0]  %s736, 16, %s6, [#allocation4]
    $region29: #{tpu_custom_call.1} parent=1 // pred_fallthru
      _
    // Predicated region
    $region30: #{tpu_custom_call.1} parent=1 // pred_check
      _
    $region31: #{tpu_custom_call.1} parent=1 // pred_check_branch
      %740 = sbr.rel (0) target = $region33
    $region32: #{tpu_custom_call.1} parent=1 // pred_region
      %741 = dma.done [#allocation4], 16
    $region33: #{tpu_custom_call.1} parent=1 // pred_fallthru
      _
    %742 = vsyncpa [#allocation4], 1

</llo_original>
